<compile_context>
chip_gen: v7x
topology: tpu7x:2x2x1
jax: 0.10.0
libtpu: 0.0.40
codegen_flags: <defaults>
</compile_context>

<pallas_src>
import functools

import jax
import jax.numpy as jnp
import numpy as np
from jax.experimental import pallas as pl
from jax.experimental.pallas import tpu as pltpu

_LANES = 128    # vreg lane width
_MAX_TR = 512   # 128-lane rows per grid step -> 12*512*128*4B = 3 MiB per block
                # (x2 pipeline buffers + temporaries fits comfortably in 32 MiB)


def _repulsion_kernel(v0, v1, slab_ref, out_ref):
    """Fused SSD decode + IoG + partial sum over one (12, TR, 128) tile.

    slab_ref : VMEM (12, TR, 128) f32 -- packed loc / prior / ground-truth slab
               rows 0:2 loc(dx,dy), 2:4 loc(dw,dh), 4:6 prior(cx,cy),
               6:8 prior(w,h), 8:10 gt(xmin,ymin), 10:12 gt(xmax,ymax).
               Padded lanes carry 0.0 everywhere except gt_max rows (= 1.0),
               so they contribute exactly 0 to the sum (no mask needed).
    out_ref  : VMEM (1, 8, 128) f32 -- lane-dense partial sum for this block.
    """
    loc_xy = slab_ref[0:2]      # (2, TR, 128)
    loc_wh = slab_ref[2:4]
    pr_xy = slab_ref[4:6]
    pr_wh = slab_ref[6:8]
    gt_min = slab_ref[8:10]
    gt_max = slab_ref[10:12]

    # ---- SSD decode, on (x,y)/(w,h) coordinate pairs ---------------------
    ctr = pr_xy + loc_xy * (v0 * pr_wh)
    wh = pr_wh * jnp.exp(loc_wh * v1)
    bmin = ctr - wh * 0.5
    bmax = bmin + wh

    # ---- IoG(ground, decoded) --------------------------------------------
    imin = jnp.maximum(gt_min, bmin)
    imax = jnp.minimum(gt_max, bmax)
    iwh = jnp.maximum(imax - imin, 0.0)
    inter = iwh[0] * iwh[1]              # (TR, 128)
    gwh = gt_max - gt_min
    g_area = gwh[0] * gwh[1]             # (TR, 128)  (== 1.0 on padded lanes)

    ratio = inter / g_area               # exact divide; padded lanes give 0/1

    # Sublane-group reduction only (plain VPU adds across vregs); the final
    # cross-lane reduction happens once in the wrapper on a tiny array.
    tr = ratio.shape[0]
    partial = ratio.reshape(tr // 8, 8, _LANES).sum(axis=0)   # (8, 128)
    out_ref[...] = partial.reshape(1, 8, _LANES)


def repulsion_loss_pallas(loc_data, ground_data, prior_data, variance=(0.1, 0.2)):
    """loc_data, ground_data, prior_data: [N, 4] float32. Returns scalar f32."""
    n = loc_data.shape[0]

    # Tiling: TR rows (multiple of 8) of 128 lanes per grid step.
    r0 = max(1, (n + _LANES - 1) // _LANES)
    if r0 <= _MAX_TR:
        tr = ((r0 + 7) // 8) * 8            # single block, rounded to sublane pack
    else:
        tr = _MAX_TR
    r = ((r0 + tr - 1) // tr) * tr
    n_pad = r * _LANES
    num_blocks = r // tr

    # One packed slab: (N,4)x3 -> (N,12) -> (12,N) -> pad -> (12, R, 128).
    # Padding: 0.0 everywhere except the gt_max rows (10:12), padded with 1.0,
    # so padded boxes decode to zero-size boxes against a unit ground box
    # -> inter = 0, g_area = 1 -> ratio = 0 (no in-kernel mask needed).
    # TODO(synk): accept a pre-packed (12, N) slab from upstream (or enable
    # allow_input_fusion) to avoid materializing this repack in HBM; for an
    # HBM-bound kernel the repack is ~half of end-to-end bytes.
    slab = jnp.concatenate([loc_data, prior_data, ground_data], axis=1)
    slab = jnp.transpose(slab).astype(jnp.float32)            # (12, N)
    if n_pad > n:
        pad_block = np.zeros((12, n_pad - n), dtype=np.float32)
        pad_block[10:12, :] = 1.0
        slab = jnp.concatenate([slab, jnp.asarray(pad_block)], axis=1)
    slab = slab.reshape(12, r, _LANES)                         # sublane-dense view

    kernel = functools.partial(
        _repulsion_kernel, float(variance[0]), float(variance[1])
    )

    partials = pl.pallas_call(
        kernel,
        out_shape=jax.ShapeDtypeStruct((num_blocks, 8, _LANES), jnp.float32),
        grid_spec=pltpu.PrefetchScalarGridSpec(
            num_scalar_prefetch=0,
            grid=(num_blocks,),
            in_specs=[
                pl.BlockSpec((12, tr, _LANES), lambda i: (0, i, 0)),
            ],
            out_specs=pl.BlockSpec((1, 8, _LANES), lambda i: (i, 0, 0)),
        ),
        compiler_params=pltpu.CompilerParams(
            dimension_semantics=("parallel",),   # independent blocks; v7x uses both TCs
            vmem_limit_bytes=32 * 1024 * 1024,   # covers 2x 3 MiB buffers + temps on v5e
        ),
    )(slab)
    return jnp.sum(partials)


def repulsion_loss_ref(loc_data, ground_data, prior_data, variance=(0.1, 0.2)):
    """Plain-JAX reference mirroring the PyTorch decode + IoG + sum."""
    boxes = jnp.concatenate(
        [
            prior_data[:, :2] + loc_data[:, :2] * variance[0] * prior_data[:, 2:],
            prior_data[:, 2:] * jnp.exp(loc_data[:, 2:] * variance[1]),
        ],
        axis=1,
    )
    boxes = boxes.at[:, :2].add(-boxes[:, 2:] / 2)
    boxes = boxes.at[:, 2:].add(boxes[:, :2])
    a, b = ground_data, boxes
    ixmin = jnp.maximum(a[:, 0], b[:, 0])
    iymin = jnp.maximum(a[:, 1], b[:, 1])
    ixmax = jnp.minimum(a[:, 2], b[:, 2])
    iymax = jnp.minimum(a[:, 3], b[:, 3])
    iw = jnp.maximum(ixmax - ixmin, 0.0)
    ih = jnp.maximum(iymax - iymin, 0.0)
    inter = iw * ih
    g = (a[:, 2] - a[:, 0]) * (a[:, 3] - a[:, 1])
    return jnp.sum(inter / g)


if __name__ == "__main__":
    key = jax.random.PRNGKey(0)
    k1, k2, k3, k4 = jax.random.split(key, 4)

    N = 200  # matched priors / ground-truth pairs (deliberately not a multiple of 128)
    variance = (0.1, 0.2)

    # loc predictions: small offsets
    loc_data = 0.2 * jax.random.normal(k1, (N, 4), dtype=jnp.float32)

    # priors in center form (cx, cy, w, h), normalized coords
    centers = jax.random.uniform(k2, (N, 2), minval=0.2, maxval=0.8)
    wh = jax.random.uniform(k3, (N, 2), minval=0.05, maxval=0.3)
    prior_data = jnp.concatenate([centers, wh], axis=1).astype(jnp.float32)

    # ground-truth boxes (xmin, ymin, xmax, ymax) with positive area
    g_centers = jax.random.uniform(k4, (N, 2), minval=0.2, maxval=0.8)
    g_wh = jax.random.uniform(k2, (N, 2), minval=0.05, maxval=0.3)
    ground_data = jnp.concatenate(
        [g_centers - g_wh / 2, g_centers + g_wh / 2], axis=1
    ).astype(jnp.float32)

    loss = repulsion_loss_pallas(loc_data, ground_data, prior_data, variance)
    loss = jax.block_until_ready(loss)

    ref = repulsion_loss_ref(loc_data, ground_data, prior_data, variance)
    np.testing.assert_allclose(np.asarray(loss), np.asarray(ref), rtol=1e-5, atol=1e-5)

    print("KERNEL_OK")
</pallas_src>

<mosaic_0001>
module attributes {stable_mosaic.version = 11 : i64} {
  func.func @_repulsion_kernel(%arg0: i32, %arg1: memref<12x8x128xf32, #tpu.memory_space<vmem>>, %arg2: memref<1x8x128xf32, #tpu.memory_space<vmem>>) attributes {dimension_semantics = [#tpu.dimension_semantics<parallel>], iteration_bounds = array<i64: 1>, scalar_prefetch = 0 : i64, scratch_operands = 0 : i64, tpu.core_type = #tpu.core_type<tc>, window_params = [{transform_indices = @transform_0, window_bounds = array<i64: 12, 8, 128>}, {transform_indices = @transform_1, window_bounds = array<i64: 1, 8, 128>}]} {
    %c0 = arith.constant 0 : index
    %c0_0 = arith.constant 0 : index
    %c0_1 = arith.constant 0 : index
    %0 = vector.load %arg1[%c0, %c0_0, %c0_1] : memref<12x8x128xf32, #tpu.memory_space<vmem>>, vector<2x8x128xf32>
    %c2 = arith.constant 2 : index
    %c0_2 = arith.constant 0 : index
    %c0_3 = arith.constant 0 : index
    %1 = vector.load %arg1[%c2, %c0_2, %c0_3] : memref<12x8x128xf32, #tpu.memory_space<vmem>>, vector<2x8x128xf32>
    %c4 = arith.constant 4 : index
    %c0_4 = arith.constant 0 : index
    %c0_5 = arith.constant 0 : index
    %2 = vector.load %arg1[%c4, %c0_4, %c0_5] : memref<12x8x128xf32, #tpu.memory_space<vmem>>, vector<2x8x128xf32>
    %c6 = arith.constant 6 : index
    %c0_6 = arith.constant 0 : index
    %c0_7 = arith.constant 0 : index
    %3 = vector.load %arg1[%c6, %c0_6, %c0_7] : memref<12x8x128xf32, #tpu.memory_space<vmem>>, vector<2x8x128xf32>
    %c8 = arith.constant 8 : index
    %c0_8 = arith.constant 0 : index
    %c0_9 = arith.constant 0 : index
    %4 = vector.load %arg1[%c8, %c0_8, %c0_9] : memref<12x8x128xf32, #tpu.memory_space<vmem>>, vector<2x8x128xf32>
    %c10 = arith.constant 10 : index
    %c0_10 = arith.constant 0 : index
    %c0_11 = arith.constant 0 : index
    %5 = vector.load %arg1[%c10, %c0_10, %c0_11] : memref<12x8x128xf32, #tpu.memory_space<vmem>>, vector<2x8x128xf32>
    %cst = arith.constant 1.000000e-01 : f32
    %6 = vector.broadcast %cst : f32 to vector<2x8x128xf32>
    %7 = arith.mulf %6, %3 : vector<2x8x128xf32>
    %8 = arith.mulf %0, %7 : vector<2x8x128xf32>
    %9 = arith.addf %2, %8 : vector<2x8x128xf32>
    %cst_12 = arith.constant 2.000000e-01 : f32
    %10 = vector.broadcast %cst_12 : f32 to vector<2x8x128xf32>
    %11 = arith.mulf %1, %10 : vector<2x8x128xf32>
    %12 = math.exp %11 : vector<2x8x128xf32>
    %13 = arith.mulf %3, %12 : vector<2x8x128xf32>
    %cst_13 = arith.constant 5.000000e-01 : f32
    %14 = vector.broadcast %cst_13 : f32 to vector<2x8x128xf32>
    %15 = arith.mulf %13, %14 : vector<2x8x128xf32>
    %16 = arith.subf %9, %15 : vector<2x8x128xf32>
    %17 = arith.addf %16, %13 : vector<2x8x128xf32>
    %18 = arith.maximumf %4, %16 : vector<2x8x128xf32>
    %19 = arith.minimumf %5, %17 : vector<2x8x128xf32>
    %20 = arith.subf %19, %18 : vector<2x8x128xf32>
    %cst_14 = arith.constant 0.000000e+00 : f32
    %21 = vector.broadcast %cst_14 : f32 to vector<2x8x128xf32>
    %22 = arith.maximumf %20, %21 : vector<2x8x128xf32>
    %23 = vector.extract_strided_slice %22 {offsets = [0, 0, 0], sizes = [1, 8, 128], strides = [1, 1, 1]} : vector<2x8x128xf32> to vector<1x8x128xf32>
    %24 = vector.shape_cast %23 : vector<1x8x128xf32> to vector<8x128xf32>
    %25 = vector.extract_strided_slice %22 {offsets = [1, 0, 0], sizes = [1, 8, 128], strides = [1, 1, 1]} : vector<2x8x128xf32> to vector<1x8x128xf32>
    %26 = vector.shape_cast %25 : vector<1x8x128xf32> to vector<8x128xf32>
    %27 = arith.mulf %24, %26 : vector<8x128xf32>
    %28 = arith.subf %5, %4 : vector<2x8x128xf32>
    %29 = vector.extract_strided_slice %28 {offsets = [0, 0, 0], sizes = [1, 8, 128], strides = [1, 1, 1]} : vector<2x8x128xf32> to vector<1x8x128xf32>
    %30 = vector.shape_cast %29 : vector<1x8x128xf32> to vector<8x128xf32>
    %31 = vector.extract_strided_slice %28 {offsets = [1, 0, 0], sizes = [1, 8, 128], strides = [1, 1, 1]} : vector<2x8x128xf32> to vector<1x8x128xf32>
    %32 = vector.shape_cast %31 : vector<1x8x128xf32> to vector<8x128xf32>
    %33 = arith.mulf %30, %32 : vector<8x128xf32>
    %34 = arith.divf %27, %33 : vector<8x128xf32>
    %35 = vector.shape_cast %34 : vector<8x128xf32> to vector<1x8x128xf32>
    %cst_15 = arith.constant dense<0.000000e+00> : vector<8x128xf32>
    %36 = vector.multi_reduction <add>, %35, %cst_15 [0] : vector<1x8x128xf32> to vector<8x128xf32>
    %37 = vector.shape_cast %36 : vector<8x128xf32> to vector<1x8x128xf32>
    %c0_16 = arith.constant 0 : index
    %c0_17 = arith.constant 0 : index
    %c0_18 = arith.constant 0 : index
    %38 = vector.load %arg2[%c0_16, %c0_17, %c0_18] : memref<1x8x128xf32, #tpu.memory_space<vmem>>, vector<1x8x128xf32>
    tpu.vector_store %arg2[%c0_16, %c0_17, %c0_18], %37 {strides = array<i32>} : memref<1x8x128xf32, #tpu.memory_space<vmem>>, vector<1x8x128xf32>,
    return
  }
  func.func @transform_0(%arg0: i32) -> (i32, i32, i32) {
    %c0_i32 = arith.constant 0 : i32
    %c0_i32_0 = arith.constant 0 : i32
    %c0_i32_1 = arith.constant 0 : i32
    return %c0_i32, %arg0, %c0_i32_0 : i32, i32, i32
  }
  func.func @transform_1(%arg0: i32) -> (i32, i32, i32) {
    %c0_i32 = arith.constant 0 : i32
    %c0_i32_0 = arith.constant 0 : i32
    %c0_i32_1 = arith.constant 0 : i32
    return %arg0, %c0_i32, %c0_i32_0 : i32, i32, i32
  }
}

</mosaic_0001>

<llo_original>
// kernel: tpu_custom_call.1
$region0: #{tpu_custom_call.1}
  #allocation0 [shape = 'u32[]', space=smem, size = 0x4, offset = 0x4, fixed_abs, tag = 'smem constant byte address 0x4 - core index']
  #allocation1 [shape = 'u32[144,128]{1,0:T(1,128)}', space=vmem, size = 0x12000, scoped, tag = 'internal scratch']
  %s0 = inlined_call_operand.hbm [shape: f32[12,8,128], index: 0, kind: input, shape index: {}]
  %s1 = inlined_call_operand.hbm [shape: f32[1,8,128], index: 1, kind: output, shape index: {}]
  %s2 = sld [smem:[#allocation0]]
  $region18: #{tpu_custom_call.1} parent=0
    _
  %s4 = ssub.s32 1, %s2
  %s5 = scalar_select 0, %s4, %s2
  $region1: #{tpu_custom_call.1} parent=0
    #allocation2 [shape = 'u8[49152]{0}', space=vmem, size = 0xc000, scoped, tag = 'input window, operand 0, single buffered']
    #allocation3 [shape = 's32[1]{0}', space=sflag, size = 0x4, scoped, tag = 'scoped memory for tpu_custom_call.1']
    #allocation4 [shape = 's32[1]{0}', space=sflag, size = 0x4, scoped, tag = 'scoped memory for tpu_custom_call.1']
    #allocation5 [shape = 'u8[4096]{0}', space=vmem, size = 0x1000, scoped, tag = 'output window, operand 0, single buffered']
    %6 = vsyncpa [#allocation3], 0
    %7 = vsyncpa [#allocation4], 0
    // Predicated region
    $region2: #{tpu_custom_call.1} parent=1 // pred_check
      _
    $region3: #{tpu_custom_call.1} parent=1 // pred_check_branch
      %9 = sbr.rel (0) target = $region5
    $region4: #{tpu_custom_call.1} parent=1 // pred_region
      %s11 = ssub.s32 1536, 1536
      %12 = vsyncadd [#allocation3], %s11
      %s13 = sshll.u32 [#allocation2], 4
      %s14 = int_to_ptr.vmem [resolvable:$true] %s13
      %19 = dma.hbm_to_vmem [thread:$0]  %s0, 1536, %s14, [#allocation3], 128, 128, 8
    $region5: #{tpu_custom_call.1} parent=1 // pred_fallthru
      _
    // Predicated region
    $region6: #{tpu_custom_call.1} parent=1 // pred_check
      _
    $region7: #{tpu_custom_call.1} parent=1 // pred_check_branch
      %21 = sbr.rel (0) target = $region9
    $region8: #{tpu_custom_call.1} parent=1 // pred_region
      %22 = dma.done [#allocation3], 1536
    $region9: #{tpu_custom_call.1} parent=1 // pred_fallthru
      _
    %v23 = vld [vmem:[#allocation2] sm:$0xff]
    %v24 = vld [vmem:[#allocation2 + $0x8] sm:$0xff]
    %s25 = scalar_lea.vmem [#allocation2], 16
    %v26 = vld [vmem:[%s25] sm:$0xff]
    %v27 = vld [vmem:[%s25 + $0x8] sm:$0xff]
    %s28 = scalar_lea.vmem [#allocation2], 32
    %v29 = vld [vmem:[%s28] sm:$0xff]
    %v30 = vld [vmem:[%s28 + $0x8] sm:$0xff]
    %s31 = scalar_lea.vmem [#allocation2], 48
    %v32 = vld [vmem:[%s31] sm:$0xff]
    %v33 = vld [vmem:[%s31 + $0x8] sm:$0xff]
    %s34 = scalar_lea.vmem [#allocation2], 64
    %v35 = vld [vmem:[%s34] sm:$0xff]
    %v36 = vld [vmem:[%s34 + $0x8] sm:$0xff]
    %s37 = scalar_lea.vmem [#allocation2], 80
    %v38 = vld [vmem:[%s37] sm:$0xff]
    %v39 = vld [vmem:[%s37 + $0x8] sm:$0xff]
    %v40 = vmul.f32 %v32, 0.1
    %v41 = vmul.f32 %v33, 0.1
    %v42 = vmul.f32 %v23, %v40
    %v43 = vmul.f32 %v24, %v41
    %v44 = vadd.f32 %v29, %v42
    %v45 = vadd.f32 %v30, %v43
    %v46 = vmul.f32 %v26, 0.2
    %v47 = vmul.f32 %v27, 0.2
    %v48 = vmul.f32 %v46, 1.442695
    %v49 = vpow.pop %v48
    %v50 = vmul.f32 %v47, 1.442695
    %v51 = vpow.pop %v50
    %v52 = vmul.f32 %v32, %v49
    %v53 = vmul.f32 %v33, %v51
    %v54 = vmul.f32 %v52, 0.5
    %v55 = vmul.f32 %v53, 0.5
    %v56 = vsub.f32 %v44, %v54
    %v57 = vsub.f32 %v45, %v55
    %v58 = vadd.f32 %v56, %v52
    %v59 = vadd.f32 %v57, %v53
    %v60 = vmax.f32 %v35, %v56
    %v61 = vmax.f32 %v36, %v57
    %v62 = vmin.f32 %v38, %v58
    %v63 = vmin.f32 %v39, %v59
    %v64 = vsub.f32 %v62, %v60
    %v65 = vsub.f32 %v63, %v61
    %v66 = vmax.f32 %v64, 0.0
    %v67 = vmax.f32 %v65, 0.0
    %v68 = vmul.f32 %v66, %v67
    %v69 = vsub.f32 %v38, %v35
    %v70 = vsub.f32 %v39, %v36
    %v71 = vmul.f32 %v69, %v70
    %v72 = vrcp.pop %v71
    %v73 = vmul.f32 %v68, %v72
    %v74 = vadd.f32 %v73, 0.0
    %75 = vst [vmem:[#allocation5] sm:$0xff] %v74
    // Predicated region
    $region10: #{tpu_custom_call.1} parent=1 // pred_check
      _
    $region11: #{tpu_custom_call.1} parent=1 // pred_check_branch
      %77 = sbr.rel (0) target = $region13
    $region12: #{tpu_custom_call.1} parent=1 // pred_region
      %s79 = ssub.s32 128, 128
      %80 = vsyncadd [#allocation4], %s79
      %s82 = sshll.u32 [#allocation5], 4
      %s83 = int_to_ptr.vmem [resolvable:$true] %s82
      %85 = dma.vmem_to_hbm [thread:$0]  %s83, 128, %s1, [#allocation4]
    $region13: #{tpu_custom_call.1} parent=1 // pred_fallthru
      _
    // Predicated region
    $region14: #{tpu_custom_call.1} parent=1 // pred_check
      _
    $region15: #{tpu_custom_call.1} parent=1 // pred_check_branch
      %87 = sbr.rel (0) target = $region17
    $region16: #{tpu_custom_call.1} parent=1 // pred_region
      %88 = dma.done [#allocation4], 128
    $region17: #{tpu_custom_call.1} parent=1 // pred_fallthru
      _
    %89 = vsyncpa [#allocation3], 1
    %90 = vsyncpa [#allocation4], 1

</llo_original>
